<compile_context>
chip_gen: v5e
topology: v5e:2x2
jax: 0.10.0
libtpu: 0.0.40
codegen_flags: <defaults>
</compile_context>

<pallas_src>
import functools

import jax
import jax.numpy as jnp
from jax.experimental import pallas as pl
from jax.experimental.pallas import tpu as pltpu


def _round_up(x, m):
    return ((x + m - 1) // m) * m


def _round_down(x, m):
    return (x // m) * m


def _vmem_capacity_bytes():
    """Physical VMEM of the current chip, with a conservative fallback."""
    try:
        info = pltpu.get_tpu_info()
        cap = getattr(info, "vmem_capacity_bytes", None)
        if cap:
            return int(cap)
    except Exception:
        pass
    return 64 * 1024 * 1024  # v7x per-TC size: safe lower bound everywhere


def _choose_tiles(B, K, itemsize, vmem_cap):
    """Pick (tile_b, tile_k) from the generation's VMEM capacity.

    Live bytes per logits-block element ~= 2x pipelined input buffers
    (input dtype) + ~2 full-block f32 temporaries inside the kernel.
    Keep that under ~40% of physical VMEM.
    """
    per_elem = 2 * itemsize + 2 * 4
    budget = max(int(vmem_cap * 0.4), 1 << 20)
    max_elems = max(budget // per_elem, 8 * 128)

    if K * 8 <= max_elems:
        tk = K                                   # full-K block fits even at tb=8
    else:
        tk = _round_down(max_elems // 8, 128)    # K-tiled (online logsumexp)
        tk = max(128, min(tk, 32 * 1024))

    tb = _round_down(max_elems // max(tk, 1), 8)
    tb = max(8, min(tb, 1024, _round_up(B, 8)))
    return tb, tk


def _ce_label_smooth_kernel(logits_ref, labels_ref, out_ref,
                            m_sc, s_sc, w_sc, *,
                            epsilon, num_classes, batch, tile_k):
    i = pl.program_id(0)      # batch-tile index (parallel)
    kj = pl.program_id(1)     # class-tile index (reduction, last)
    nk = pl.num_programs(1)

    @pl.when(kj == 0)
    def _init():
        m_sc[...] = jnp.full_like(m_sc, -jnp.inf)
        s_sc[...] = jnp.zeros_like(s_sc)
        w_sc[...] = jnp.zeros_like(w_sc)

    x = logits_ref[...].astype(jnp.float32)               # (TB, TK)
    tb, tk = x.shape

    # Global class ids for this K tile; mask the ragged last class tile.
    class_ids = kj * tile_k + jax.lax.broadcasted_iota(jnp.int32, (tb, tk), 1)
    valid = class_ids < num_classes
    labels = labels_ref[...]                               # (TB, 1) int32

    # --- Online (streaming) logsumexp carry ------------------------------
    x_for_max = jnp.where(valid, x, -jnp.inf)
    m_new = jnp.maximum(m_sc[...], jnp.max(x_for_max, axis=1, keepdims=True))
    alpha = jnp.exp(m_sc[...] - m_new)                     # 0 on first tile
    p = jnp.where(valid, jnp.exp(x - m_new), 0.0)
    s_sc[...] = alpha * s_sc[...] + jnp.sum(p, axis=1, keepdims=True)
    m_sc[...] = m_new

    # --- Fused smoothed-target weighted reduction ------------------------
    #   sum_k x_k * ( eps/K + (1-eps)*[k == label] )
    w_hit = 1.0 - epsilon + epsilon / num_classes
    w_lo = epsilon / num_classes
    xz = jnp.where(valid, x, 0.0)                          # zero padded cols
    w = jnp.where(class_ids == labels, w_hit, w_lo)
    w_sc[...] = w_sc[...] + jnp.sum(xz * w, axis=1, keepdims=True)

    # --- Finalize on the last class tile ----------------------------------
    @pl.when(kj == nk - 1)
    def _finalize():
        lse = jnp.log(s_sc[...]) + m_sc[...]               # (TB, 1)
        loss_row = lse - w_sc[...]                         # (TB, 1)
        # Drop padded rows of a ragged last batch tile.
        row_ids = i * tb + jax.lax.broadcasted_iota(jnp.int32, (tb, 1), 0)
        partial = jnp.sum(jnp.where(row_ids < batch, loss_row, 0.0))
        # Lane-dense (1,8,128) slab; wrapper reads [t,0,0] only.
        out_ref[...] = jnp.broadcast_to(partial, out_ref.shape).astype(jnp.float32)


def cross_entropy_label_smooth(logits, labels, *, epsilon=0.1, tile_b=None,
                               tile_k=None, vmem_limit_bytes=None):
    """logits: (B, K) float (f32 or bf16), labels: (B,) int. Returns scalar f32 loss."""
    B, K = logits.shape
    labels2d = labels.astype(jnp.int32).reshape(B, 1)
    itemsize = jnp.dtype(logits.dtype).itemsize

    vmem_cap = _vmem_capacity_bytes()
    tb, tk = _choose_tiles(B, K, itemsize, vmem_cap)

    if tile_b is not None:
        tb = max(8, (int(tile_b) // 8) * 8)
        tb = min(tb, _round_up(B, 8))
    if tile_k is not None:
        tk = int(tile_k)
        if tk >= K:
            tk = K
        else:
            tk = max(128, (tk // 128) * 128)

    if vmem_limit_bytes is None:
        # ~75% of physical VMEM: ~96 MiB on v5e/v6e, ~48 MiB on v7x.
        vmem_limit_bytes = min(int(vmem_cap * 3 // 4), 100 * 1024 * 1024)
    vmem_limit_bytes = int(vmem_limit_bytes)

    # Fail loudly (not a Mosaic OOM) if a forced tile cannot fit.
    est_bytes = tb * tk * (2 * itemsize + 2 * 4) + 4 * tb * 4
    if est_bytes > vmem_limit_bytes:
        raise ValueError(
            f"Requested tile ({tb}x{tk}) needs ~{est_bytes} bytes of VMEM, "
            f"exceeding vmem_limit_bytes={vmem_limit_bytes}; shrink tile_b/tile_k.")

    num_btiles = pl.cdiv(B, tb)
    num_ktiles = pl.cdiv(K, tk)

    kernel = functools.partial(
        _ce_label_smooth_kernel,
        epsilon=float(epsilon), num_classes=int(K), batch=int(B),
        tile_k=int(tk))

    partials = pl.pallas_call(
        kernel,
        out_shape=jax.ShapeDtypeStruct((num_btiles, 8, 128), jnp.float32),
        grid_spec=pltpu.PrefetchScalarGridSpec(
            num_scalar_prefetch=0,
            grid=(num_btiles, num_ktiles),
            in_specs=[
                pl.BlockSpec((tb, tk), lambda i, k: (i, k)),
                pl.BlockSpec((tb, 1), lambda i, k: (i, 0)),
            ],
            out_specs=pl.BlockSpec((1, 8, 128), lambda i, k: (i, 0, 0)),
            scratch_shapes=[
                pltpu.VMEM((tb, 1), jnp.float32),   # running max
                pltpu.VMEM((tb, 1), jnp.float32),   # running sum(exp)
                pltpu.VMEM((tb, 1), jnp.float32),   # running weighted sum
            ],
        ),
        compiler_params=pltpu.CompilerParams(
            dimension_semantics=("parallel", "arbitrary"),
            vmem_limit_bytes=vmem_limit_bytes,
        ),
    )(logits, labels2d)

    # Tiny final reduction in the wrapper (each tile's value lives at [t,0,0]).
    return jnp.sum(partials[:, 0, 0]) / B


def _reference(logits, labels, epsilon=0.1):
    # Pure-JAX reference matching the PyTorch forward exactly.
    log_probs = jax.nn.log_softmax(logits.astype(jnp.float32), axis=1)
    K = logits.shape[1]
    one_hot = jax.nn.one_hot(labels, K, dtype=jnp.float32)
    targets = (1.0 - epsilon) * one_hot + epsilon / K
    return (-targets * log_probs).mean(0).sum()


if __name__ == "__main__":
    key = jax.random.PRNGKey(0)
    k1, k2, k3, k4 = jax.random.split(key, 4)

    # Test 1: small shape consistent with the module (single tile, full-K block).
    batch, num_classes = 8, 32
    logits = jax.random.normal(k1, (batch, num_classes), dtype=jnp.float32)
    labels = jax.random.randint(k2, (batch,), 0, num_classes, dtype=jnp.int32)

    loss = cross_entropy_label_smooth(logits, labels, epsilon=0.1)
    loss = jax.block_until_ready(loss)
    ref = _reference(logits, labels, epsilon=0.1)
    assert jnp.allclose(loss, ref, rtol=1e-5, atol=1e-5), (loss, ref)

    # Test 2: multi-tile grid with ragged last batch AND class tiles
    # (exercises batch tiling, K tiling / online logsumexp, and masking).
    batch2, num_classes2 = 40, 160
    logits2 = jax.random.normal(k3, (batch2, num_classes2), dtype=jnp.float32)
    labels2 = jax.random.randint(k4, (batch2,), 0, num_classes2, dtype=jnp.int32)

    loss2 = cross_entropy_label_smooth(logits2, labels2, epsilon=0.1,
                                       tile_b=16, tile_k=128)
    loss2 = jax.block_until_ready(loss2)
    ref2 = _reference(logits2, labels2, epsilon=0.1)
    assert jnp.allclose(loss2, ref2, rtol=1e-5, atol=1e-5), (loss2, ref2)

    print("KERNEL_OK")
</pallas_src>

<mosaic_0001>
module attributes {stable_mosaic.version = 11 : i64} {
  func.func @_ce_label_smooth_kernel(%arg0: i32, %arg1: i32, %arg2: memref<8x32xf32, #tpu.memory_space<vmem>>, %arg3: memref<8x1xi32, #tpu.memory_space<vmem>>, %arg4: memref<1x8x128xf32, #tpu.memory_space<vmem>>, %arg5: memref<8x1xf32, #tpu.memory_space<vmem>>, %arg6: memref<8x1xf32, #tpu.memory_space<vmem>>, %arg7: memref<8x1xf32, #tpu.memory_space<vmem>>) attributes {dimension_semantics = [#tpu.dimension_semantics<parallel>, #tpu.dimension_semantics<arbitrary>], iteration_bounds = array<i64: 1, 1>, scalar_prefetch = 0 : i64, scratch_operands = 3 : i64, tpu.core_type = #tpu.core_type<tc>, window_params = [{transform_indices = @transform_0, window_bounds = array<i64: 8, 32>}, {transform_indices = @transform_1, window_bounds = array<i64: 8, 1>}, {transform_indices = @transform_2, window_bounds = array<i64: 1, 8, 128>}]} {
    %c0_i32 = arith.constant 0 : i32
    %0 = arith.cmpi eq, %arg1, %c0_i32 : i32
    %1 = arith.extui %0 : i1 to i32
    %c0_i32_0 = arith.constant 0 : i32
    %2 = arith.cmpi ne, %1, %c0_i32_0 : i32
    scf.if %2 {
      %cst_28 = arith.constant 0xFF800000 : f32
      %48 = vector.broadcast %cst_28 : f32 to vector<8x1xf32>
      %c0_29 = arith.constant 0 : index
      %c0_30 = arith.constant 0 : index
      %49 = vector.load %arg5[%c0_29, %c0_30] : memref<8x1xf32, #tpu.memory_space<vmem>>, vector<8x1xf32>
      tpu.vector_store %arg5[%c0_29, %c0_30], %48 {strides = array<i32>} : memref<8x1xf32, #tpu.memory_space<vmem>>, vector<8x1xf32>,
      %cst_31 = arith.constant 0.000000e+00 : f32
      %50 = vector.broadcast %cst_31 : f32 to vector<8x1xf32>
      %c0_32 = arith.constant 0 : index
      %c0_33 = arith.constant 0 : index
      %51 = vector.load %arg6[%c0_32, %c0_33] : memref<8x1xf32, #tpu.memory_space<vmem>>, vector<8x1xf32>
      tpu.vector_store %arg6[%c0_32, %c0_33], %50 {strides = array<i32>} : memref<8x1xf32, #tpu.memory_space<vmem>>, vector<8x1xf32>,
      %cst_34 = arith.constant 0.000000e+00 : f32
      %52 = vector.broadcast %cst_34 : f32 to vector<8x1xf32>
      %c0_35 = arith.constant 0 : index
      %c0_36 = arith.constant 0 : index
      %53 = vector.load %arg7[%c0_35, %c0_36] : memref<8x1xf32, #tpu.memory_space<vmem>>, vector<8x1xf32>
      tpu.vector_store %arg7[%c0_35, %c0_36], %52 {strides = array<i32>} : memref<8x1xf32, #tpu.memory_space<vmem>>, vector<8x1xf32>,
    } else {
    }
    %c0 = arith.constant 0 : index
    %c0_1 = arith.constant 0 : index
    %3 = vector.load %arg2[%c0, %c0_1] : memref<8x32xf32, #tpu.memory_space<vmem>>, vector<8x32xf32>
    %c32_i32 = arith.constant 32 : i32
    %4 = arith.muli %arg1, %c32_i32 : i32
    %5 = tpu.iota {dimensions = array<i32: 1>} : vector<8x32xi32>
    %6 = vector.broadcast %4 : i32 to vector<8x32xi32>
    %7 = arith.addi %6, %5 : vector<8x32xi32>
    %c32_i32_2 = arith.constant 32 : i32
    %8 = vector.broadcast %c32_i32_2 : i32 to vector<8x32xi32>
    %9 = arith.cmpi slt, %7, %8 : vector<8x32xi32>
    %c0_3 = arith.constant 0 : index
    %c0_4 = arith.constant 0 : index
    %10 = vector.load %arg3[%c0_3, %c0_4] : memref<8x1xi32, #tpu.memory_space<vmem>>, vector<8x1xi32>
    %cst = arith.constant 0xFF800000 : f32
    %11 = vector.broadcast %cst : f32 to vector<8x32xf32>
    %12 = arith.select %9, %3, %11 : vector<8x32xi1>, vector<8x32xf32>
    %c0_5 = arith.constant 0 : index
    %c0_6 = arith.constant 0 : index
    %13 = vector.load %arg5[%c0_5, %c0_6] : memref<8x1xf32, #tpu.memory_space<vmem>>, vector<8x1xf32>
    %cst_7 = arith.constant dense<0xFF800000> : vector<8xf32>
    %14 = vector.multi_reduction <maximumf>, %12, %cst_7 [1] : vector<8x32xf32> to vector<8xf32>
    %15 = vector.shape_cast %14 : vector<8xf32> to vector<8x1xf32>
    %16 = arith.maximumf %13, %15 : vector<8x1xf32>
    %c0_8 = arith.constant 0 : index
    %c0_9 = arith.constant 0 : index
    %17 = vector.load %arg5[%c0_8, %c0_9] : memref<8x1xf32, #tpu.memory_space<vmem>>, vector<8x1xf32>
    %18 = arith.subf %17, %16 : vector<8x1xf32>
    %19 = math.exp %18 : vector<8x1xf32>
    %20 = vector.broadcast %16 : vector<8x1xf32> to vector<8x32xf32>
    %21 = arith.subf %3, %20 : vector<8x32xf32>
    %22 = math.exp %21 : vector<8x32xf32>
    %cst_10 = arith.constant 0.000000e+00 : f32
    %23 = vector.broadcast %cst_10 : f32 to vector<8x32xf32>
    %24 = arith.select %9, %22, %23 : vector<8x32xi1>, vector<8x32xf32>
    %c0_11 = arith.constant 0 : index
    %c0_12 = arith.constant 0 : index
    %25 = vector.load %arg6[%c0_11, %c0_12] : memref<8x1xf32, #tpu.memory_space<vmem>>, vector<8x1xf32>
    %26 = arith.mulf %19, %25 : vector<8x1xf32>
    %cst_13 = arith.constant dense<0.000000e+00> : vector<8xf32>
    %27 = vector.multi_reduction <add>, %24, %cst_13 [1] : vector<8x32xf32> to vector<8xf32>
    %28 = vector.shape_cast %27 : vector<8xf32> to vector<8x1xf32>
    %29 = arith.addf %26, %28 : vector<8x1xf32>
    %c0_14 = arith.constant 0 : index
    %c0_15 = arith.constant 0 : index
    %30 = vector.load %arg6[%c0_14, %c0_15] : memref<8x1xf32, #tpu.memory_space<vmem>>, vector<8x1xf32>
    tpu.vector_store %arg6[%c0_14, %c0_15], %29 {strides = array<i32>} : memref<8x1xf32, #tpu.memory_space<vmem>>, vector<8x1xf32>,
    %c0_16 = arith.constant 0 : index
    %c0_17 = arith.constant 0 : index
    %31 = vector.load %arg5[%c0_16, %c0_17] : memref<8x1xf32, #tpu.memory_space<vmem>>, vector<8x1xf32>
    tpu.vector_store %arg5[%c0_16, %c0_17], %16 {strides = array<i32>} : memref<8x1xf32, #tpu.memory_space<vmem>>, vector<8x1xf32>,
    %cst_18 = arith.constant 0.000000e+00 : f32
    %32 = vector.broadcast %cst_18 : f32 to vector<8x32xf32>
    %33 = arith.select %9, %3, %32 : vector<8x32xi1>, vector<8x32xf32>
    %34 = vector.broadcast %10 : vector<8x1xi32> to vector<8x32xi32>
    %35 = arith.cmpi eq, %7, %34 : vector<8x32xi32>
    %cst_19 = arith.constant 0.903124988 : f32
    %cst_20 = arith.constant 3.125000e-03 : f32
    %36 = vector.broadcast %cst_19 : f32 to vector<8x32xf32>
    %37 = vector.broadcast %cst_20 : f32 to vector<8x32xf32>
    %38 = arith.select %35, %36, %37 : vector<8x32xi1>, vector<8x32xf32>
    %c0_21 = arith.constant 0 : index
    %c0_22 = arith.constant 0 : index
    %39 = vector.load %arg7[%c0_21, %c0_22] : memref<8x1xf32, #tpu.memory_space<vmem>>, vector<8x1xf32>
    %40 = arith.mulf %33, %38 : vector<8x32xf32>
    %cst_23 = arith.constant dense<0.000000e+00> : vector<8xf32>
    %41 = vector.multi_reduction <add>, %40, %cst_23 [1] : vector<8x32xf32> to vector<8xf32>
    %42 = vector.shape_cast %41 : vector<8xf32> to vector<8x1xf32>
    %43 = arith.addf %39, %42 : vector<8x1xf32>
    %c0_24 = arith.constant 0 : index
    %c0_25 = arith.constant 0 : index
    %44 = vector.load %arg7[%c0_24, %c0_25] : memref<8x1xf32, #tpu.memory_space<vmem>>, vector<8x1xf32>
    tpu.vector_store %arg7[%c0_24, %c0_25], %43 {strides = array<i32>} : memref<8x1xf32, #tpu.memory_space<vmem>>, vector<8x1xf32>,
    %c0_i32_26 = arith.constant 0 : i32
    %45 = arith.cmpi eq, %arg1, %c0_i32_26 : i32
    %46 = arith.extui %45 : i1 to i32
    %c0_i32_27 = arith.constant 0 : i32
    %47 = arith.cmpi ne, %46, %c0_i32_27 : i32
    scf.if %47 {
      %c0_28 = arith.constant 0 : index
      %c0_29 = arith.constant 0 : index
      %48 = vector.load %arg6[%c0_28, %c0_29] : memref<8x1xf32, #tpu.memory_space<vmem>>, vector<8x1xf32>
      %49 = math.log %48 : vector<8x1xf32>
      %c0_30 = arith.constant 0 : index
      %c0_31 = arith.constant 0 : index
      %50 = vector.load %arg5[%c0_30, %c0_31] : memref<8x1xf32, #tpu.memory_space<vmem>>, vector<8x1xf32>
      %51 = arith.addf %49, %50 : vector<8x1xf32>
      %c0_32 = arith.constant 0 : index
      %c0_33 = arith.constant 0 : index
      %52 = vector.load %arg7[%c0_32, %c0_33] : memref<8x1xf32, #tpu.memory_space<vmem>>, vector<8x1xf32>
      %53 = arith.subf %51, %52 : vector<8x1xf32>
      %c8_i32 = arith.constant 8 : i32
      %54 = arith.muli %arg0, %c8_i32 : i32
      %55 = tpu.iota {dimensions = array<i32: 0>} : vector<8x1xi32>
      %56 = vector.broadcast %54 : i32 to vector<8x1xi32>
      %57 = arith.addi %56, %55 : vector<8x1xi32>
      %c8_i32_34 = arith.constant 8 : i32
      %58 = vector.broadcast %c8_i32_34 : i32 to vector<8x1xi32>
      %59 = arith.cmpi slt, %57, %58 : vector<8x1xi32>
      %cst_35 = arith.constant 0.000000e+00 : f32
      %60 = vector.broadcast %cst_35 : f32 to vector<8x1xf32>
      %61 = arith.select %59, %53, %60 : vector<8x1xi1>, vector<8x1xf32>
      %62 = vector.shape_cast %61 : vector<8x1xf32> to vector<1x8x1xf32>
      %cst_36 = arith.constant dense<0.000000e+00> : vector<1xf32>
      %63 = vector.multi_reduction <add>, %62, %cst_36 [1, 2] : vector<1x8x1xf32> to vector<1xf32>
      %64 = vector.shape_cast %63 : vector<1xf32> to vector<1x1x1xf32>
      %65 = vector.extract %64[0, 0, 0] : f32 from vector<1x1x1xf32>
      %66 = vector.broadcast %65 : f32 to vector<1x8x128xf32>
      %c0_37 = arith.constant 0 : index
      %c0_38 = arith.constant 0 : index
      %c0_39 = arith.constant 0 : index
      %67 = vector.load %arg4[%c0_37, %c0_38, %c0_39] : memref<1x8x128xf32, #tpu.memory_space<vmem>>, vector<1x8x128xf32>
      tpu.vector_store %arg4[%c0_37, %c0_38, %c0_39], %66 {strides = array<i32>} : memref<1x8x128xf32, #tpu.memory_space<vmem>>, vector<1x8x128xf32>,
    } else {
    }
    return
  }
  func.func @transform_0(%arg0: i32, %arg1: i32) -> (i32, i32) {
    %c0_i32 = arith.constant 0 : i32
    return %arg0, %arg1 : i32, i32
  }
  func.func @transform_1(%arg0: i32, %arg1: i32) -> (i32, i32) {
    %c0_i32 = arith.constant 0 : i32
    %c0_i32_0 = arith.constant 0 : i32
    return %arg0, %c0_i32 : i32, i32
  }
  func.func @transform_2(%arg0: i32, %arg1: i32) -> (i32, i32, i32) {
    %c0_i32 = arith.constant 0 : i32
    %c0_i32_0 = arith.constant 0 : i32
    %c0_i32_1 = arith.constant 0 : i32
    return %arg0, %c0_i32, %c0_i32_0 : i32, i32, i32
  }
}

</mosaic_0001>

<llo_original>
// kernel: tpu_custom_call.1
$region0: #{tpu_custom_call.1}
  #allocation0 [shape = 'u32[]', space=smem, size = 0x4, offset = 0x4, fixed_abs, tag = 'smem constant byte address 0x4 - core index']
  #allocation1 [shape = 'u32[72,128]{1,0:T(1,128)}', space=vmem, size = 0x9000, scoped, tag = 'internal scratch']
  #allocation2 [shape = 'f32[8,1]{1,0:T(8,128)}', space=vmem, size = 0x1000, scoped, tag = 'scratch operand']
  #allocation3 [shape = 'f32[8,1]{1,0:T(8,128)}', space=vmem, size = 0x1000, scoped, tag = 'scratch operand']
  #allocation4 [shape = 'f32[8,1]{1,0:T(8,128)}', space=vmem, size = 0x1000, scoped, tag = 'scratch operand']
  %s0 = inlined_call_operand.vmem [shape: f32[8,32], index: 0, kind: input, shape index: {}]
  %s1 = inlined_call_operand.vmem [shape: s32[8,1], index: 1, kind: input, shape index: {}]
  %s2 = inlined_call_operand.hbm [shape: f32[1,8,128], index: 2, kind: output, shape index: {}]
  %s3 = sld [smem:[#allocation0]]
  $region26: #{tpu_custom_call.1} parent=0
    _
  %s5 = ssub.s32 1, %s3
  %s6 = scalar_select 0, %s5, %s3
  $region1: #{tpu_custom_call.1} parent=0
    #allocation5 [shape = 'u8[4096]{0}', space=vmem, size = 0x1000, scoped, tag = 'output window, operand 0, single buffered']
    #allocation6 [shape = 's32[1]{0}', space=sflag, size = 0x4, scoped, tag = 'scoped memory for tpu_custom_call.1']
    %7 = vsyncpa [#allocation6], 0
    // Predicated region
    $region2: #{tpu_custom_call.1} parent=1 // pred_check
      _
    $region3: #{tpu_custom_call.1} parent=1 // pred_check_branch
      %9 = sbr.rel (0) target = $region5
    $region4: #{tpu_custom_call.1} parent=1 // pred_region
      _
    $region5: #{tpu_custom_call.1} parent=1 // pred_fallthru
      _
    // Predicated region
    $region6: #{tpu_custom_call.1} parent=1 // pred_check
      _
    $region7: #{tpu_custom_call.1} parent=1 // pred_check_branch
      %11 = sbr.rel (0) target = $region9
    $region8: #{tpu_custom_call.1} parent=1 // pred_region
      _
    $region9: #{tpu_custom_call.1} parent=1 // pred_fallthru
      _
    %p12 = scmp.eq.s32.totalorder 0, 0
    // Predicated region
    $region10: #{tpu_custom_call.1} parent=1 // pred_check
      %p13 = pneg %p12
    $region11: #{tpu_custom_call.1} parent=1 // pred_check_branch
      %15 = sbr.rel (%p13) target = $region13
    $region12: #{tpu_custom_call.1} parent=1 // pred_region
      %vm16 = vcmask 7168
      %17 = vst.msk [vmem:[#allocation2] sm:$0xff] %vm16, -inf
      %18 = vst.msk [vmem:[#allocation3] sm:$0xff] %vm16, 0.0
      %19 = vst.msk [vmem:[#allocation4] sm:$0xff] %vm16, 0.0
    $region13: #{tpu_custom_call.1} parent=1 // pred_fallthru
      _
    %v20 = vld [vmem:[%s0] sm:$0xff]
    %s21 = smul.u32 0, 32
    %v22 = vlaneseq
    %v23 = vand.u32 %v22, 127
    %v24 = vstv %s21
    %v25 = vadd.s32 %v24, %v23
    %vm26 = vcmp.lt.s32.totalorder %v25, 32
    %v27 = vld [vmem:[%s1] sm:$0xff]
    %v28 = vsel %vm26, %v20, -inf
    %v29 = vld [vmem:[#allocation2] sm:$0xff]
    %vm30 = vcmask 261120
    %v31 = vsel %vm30, %v28, -inf
    %32 = vmax.xlane.f32.xlu0 %v31
    %v33 = vpop.xlane.xlu0 %32
    %v34 = vmax.f32 %v29, %v33
    %v35 = vsub.f32 %v29, %v34
    %v36 = vmul.f32 %v35, 1.442695
    %v37 = vpow.pop %v36
    %39 = vset.pattern.permute.xlu0 0
    %40 = vperm.xlu0 %39, %v34
    %v41 = vpop.permute.xlu0 %40
    %v43 = vsub.f32 %v20, %v41
    %v44 = vmul.f32 %v43, 1.442695
    %v45 = vpow.pop %v44
    %v46 = vsel %vm26, %v45, 0.0
    %v47 = vld [vmem:[#allocation3] sm:$0xff]
    %v48 = vmul.f32 %v37, %v47
    %v49 = vsel %vm30, %v46, 0.0
    %50 = vadd.xlane.f32.xlu0 %v49
    %v51 = vpop.xlane.xlu0 %50
    %v52 = vadd.f32 %v48, %v51
    %vm53 = vcmask 7168
    %54 = vst.msk [vmem:[#allocation3] sm:$0xff] %vm53, %v52
    %55 = vst.msk [vmem:[#allocation2] sm:$0xff] %vm53, %v34
    %v56 = vsel %vm26, %v20, 0.0
    %57 = vset.pattern.permute.xlu0 0
    %58 = vperm.xlu0 %57, %v27
    %v59 = vpop.permute.xlu0 %58
    %vm60 = vcmp.eq.s32.totalorder %v25, %v59
    %v61 = vsel %vm60, 0.903125, 0.003125
    %v62 = vld [vmem:[#allocation4] sm:$0xff]
    %v63 = vmul.f32 %v56, %v61
    %v64 = vsel %vm30, %v63, 0.0
    %65 = vadd.xlane.f32.xlu0 %v64
    %v66 = vpop.xlane.xlu0 %65
    %v67 = vadd.f32 %v62, %v66
    %68 = vst.msk [vmem:[#allocation4] sm:$0xff] %vm53, %v67
    // Predicated region
    $region14: #{tpu_custom_call.1} parent=1 // pred_check
      %p69 = pneg %p12
    $region15: #{tpu_custom_call.1} parent=1 // pred_check_branch
      %71 = sbr.rel (%p69) target = $region17
    $region16: #{tpu_custom_call.1} parent=1 // pred_region
      %v72 = vld [vmem:[#allocation3] sm:$0xff]
      %v73 = vlog2.pop %v72
      %v74 = vmul.f32 %v73, 0.6931472
      %v75 = vld [vmem:[#allocation2] sm:$0xff]
      %v76 = vadd.f32 %v74, %v75
      %v77 = vld [vmem:[#allocation4] sm:$0xff]
      %v78 = vsub.f32 %v76, %v77
      %s79 = smul.u32 0, 8
      %v80 = vlaneseq
      %v81 = vshrl.u32 %v80, 7
      %v82 = vstv %s79
      %v83 = vadd.s32 %v82, %v81
      %vm84 = vcmp.lt.s32.totalorder %v83, 8
      %v85 = vsel %vm84, %v78, 0.0
      %v86 = vsel %vm53, %v85, 0.0
      %87 = vadd.xlane.f32.xlu0 %v86
      %v88 = vpop.xlane.xlu0 %87
      %v89 = vrot.slane %v88, 4
      %v90 = vadd.f32 %v88, %v89
      %v91 = vrot.slane %v90, 2
      %v92 = vadd.f32 %v90, %v91
      %v93 = vrot.slane %v92, 1
      %v94 = vadd.f32 %v92, %v93
      %s95 = vtos %v94
      %v96 = vstv %s95
      %97 = vst [vmem:[#allocation5] sm:$0xff] %v96
    $region17: #{tpu_custom_call.1} parent=1 // pred_fallthru
      _
    // Predicated region
    $region18: #{tpu_custom_call.1} parent=1 // pred_check
      _
    $region19: #{tpu_custom_call.1} parent=1 // pred_check_branch
      %99 = sbr.rel (0) target = $region21
    $region20: #{tpu_custom_call.1} parent=1 // pred_region
      %101 = vsyncadd [#allocation6], 0
      %s103 = sshll.u32 [#allocation5], 4
      %s104 = int_to_ptr.vmem [resolvable:$true] %s103
      %s105 = sshll.u32 %s2, 4
      %s106 = int_to_ptr.hbm [resolvable:$true] %s105
      %108 = dma.vmem_to_hbm [thread:$0]  %s104, 128, %s106, [#allocation6]
    $region21: #{tpu_custom_call.1} parent=1 // pred_fallthru
      _
    // Predicated region
    $region22: #{tpu_custom_call.1} parent=1 // pred_check
      _
    $region23: #{tpu_custom_call.1} parent=1 // pred_check_branch
      %110 = sbr.rel (0) target = $region25
    $region24: #{tpu_custom_call.1} parent=1 // pred_region
      %112 = dma.done [#allocation6], 128
    $region25: #{tpu_custom_call.1} parent=1 // pred_fallthru
      _
    %113 = vsyncpa [#allocation6], 1

</llo_original>
